<compile_context>
chip_gen: v7x
topology: tpu7x:2x2x1
jax: 0.10.0
libtpu: 0.0.40
codegen_flags: <defaults>
</compile_context>

<pallas_src>
import functools

import jax
import jax.numpy as jnp
from jax.experimental import pallas as pl
from jax.experimental.pallas import tpu as pltpu


def _round_up(n, m):
    return ((n + m - 1) // m) * m


def _vmem_step_bytes(t_tile, F, K, out_itemsize):
    """Physical VMEM bytes per grid step (lane dim padded to 128, rows to 8)."""
    lf = _round_up(F, 128)
    lkf = _round_up(K * F, 128)
    rows = _round_up(t_tile, 8)
    pad = (K - 1) // 2
    hrows = _round_up(max(2 * pad, 1), 8)
    x_buf = rows * lf * 4                       # f32 input tile
    halo_buf = hrows * lf * 4                   # f32 halo rows
    o_buf = rows * lf * out_itemsize            # output tile
    w_buf = _round_up(K * F, 8) * lf * 2        # bf16 resident im2col weights
    b_buf = 8 * lf * 4                          # f32 bias row
    stage = rows * lkf * 2                      # bf16 im2col stage scratch (single)
    # Input/output (and the constant weight/bias) blocks are double-buffered by
    # the BlockSpec pipeline; the stage scratch is a single allocation.
    return 2 * (x_buf + halo_buf + o_buf + w_buf + b_buf) + stage


def _choose_time_tiling(T, F, K, out_itemsize, target, vmem_budget):
    """Return (t_tile, padded_T).

    Largest multiple-of-8 time tile <= target that divides T, with the target
    shrunk until the per-step VMEM estimate fits the budget.  If T has no such
    divisor, the tile stays bounded and T is padded up to a multiple of it
    (never fall back to a single T-sized tile)."""
    pad = (K - 1) // 2
    target = max(_round_up(max(8, pad), 8), (target // 8) * 8)
    while target > 8 and _vmem_step_bytes(min(target, T), F, K, out_itemsize) > vmem_budget:
        target = max(8, _round_up(target // 2, 8))
    if _vmem_step_bytes(min(target, T), F, K, out_itemsize) > vmem_budget:
        # TODO(synk): tile the feature dimension as well for very large n_features.
        raise ValueError("n_features too large for the resident-weight ConvLayer kernel")
    if T <= target:
        return T, T                              # single time tile (block == full dim)
    tt = target
    while tt >= 8:
        if T % tt == 0 and tt >= pad:
            return tt, T
        tt -= 8
    return target, _round_up(T, target)          # bounded tile + zero-padded time tail


def _conv1d_kernel(x_ref, halo_ref, w_ref, b_ref, o_ref, stage_ref,
                   *, K, pad, t_tile, F):
    # x_ref    : (t_tile, F)        f32   current time tile of one batch element
    # halo_ref : (max(2*pad,1), F)  f32   rows [t0-pad,t0) ++ [t0+t_tile,t0+t_tile+pad),
    #                                     zeroed outside [0, T) by the wrapper
    # w_ref    : (K*F, F)           bf16  im2col weight, row k*F+ci <-> weight[co, ci, k]
    # b_ref    : (1, F)             f32
    # o_ref    : (t_tile, F)        out dtype
    # stage_ref: (t_tile, K*F)      bf16  im2col staging scratch
    xv = x_ref[...]                                       # single load of the tile (f32)
    for k in range(K):                                    # static unroll over taps
        s = k - pad                                       # signed time shift of this tap
        col = pl.ds(k * F, F)
        if s == 0:
            stage_ref[:, col] = xv.astype(jnp.bfloat16)   # in-kernel bf16 cast
            continue
        # Bulk: full-row store of the rolled tile (roll runs on the otherwise-idle
        # XLU slot; the f32 -> bf16 cast happens here, inside the kernel).
        rolled = pltpu.roll(xv, shift=(-s) % t_tile, axis=0)
        stage_ref[:, col] = rolled.astype(jnp.bfloat16)
        # Fix-up: the |s| rows that wrapped around take halo data instead
        # (tiny <=pad-row stores; these also realize ConstantPad1d's zeros at the
        # sequence boundaries because the wrapper zeroes out-of-range halo rows).
        m = -s if s < 0 else s
        if s < 0:    # first m rows <- top-halo rows [pad-m, pad)
            stage_ref[pl.ds(0, m), col] = (
                halo_ref[pl.ds(pad - m, m), :].astype(jnp.bfloat16))
        else:        # last m rows  <- bottom-halo rows [pad, pad+m)
            stage_ref[pl.ds(t_tile - m, m), col] = (
                halo_ref[pl.ds(pad, m), :].astype(jnp.bfloat16))

    # One fused matmul over the K*F contraction dim; f32 accumulation, f32
    # bias + ReLU epilogue, cast only at the final store.
    acc = jnp.dot(stage_ref[...], w_ref[...], preferred_element_type=jnp.float32)
    o_ref[...] = jnp.maximum(acc + b_ref[...], 0.0).astype(o_ref.dtype)


def conv_layer_forward(x, weight, bias, *, kernel_size=7, t_tile_target=512,
                       out_dtype=None, vmem_budget=16 * 1024 * 1024):
    """ConvLayer forward.

    x: (B, T, F) f32; weight: (F, F, K) in PyTorch Conv1d (out, in, k) layout;
    bias: (F,).  Returns (B, T, F) in `out_dtype` (default: x.dtype, i.e. the
    module's f32 contract; pass jnp.bfloat16 to halve output HBM traffic).
    Precision contract: x and weight are used as bf16 MXU operands with f32
    accumulation and an f32 bias+ReLU epilogue."""
    B, T, F = x.shape
    K = kernel_size
    assert K % 2 == 1, "pad=(K-1)//2 matches PyTorch's output length only for odd K"
    assert weight.shape == (F, F, K) and bias.shape == (F,)
    assert T >= K, "time dimension must be >= kernel_size"
    pad = (K - 1) // 2
    out_dtype = x.dtype if out_dtype is None else out_dtype
    out_itemsize = jnp.dtype(out_dtype).itemsize

    t_tile, Tp = _choose_time_tiling(T, F, K, out_itemsize, t_tile_target, vmem_budget)
    x_p = x if Tp == T else jnp.pad(x, ((0, 0), (0, Tp - T), (0, 0)))   # rare awkward-T case
    nt = Tp // t_tile

    # Per-tile halo rows (pad above + pad below each time tile), built with static
    # slices/concats only (no XLA gather); zeros at the sequence boundaries
    # reproduce ConstantPad1d.  Tiny side tensor: 2*pad rows per tile.
    if pad == 0:
        halos = jnp.zeros((B, nt, 1, F), x_p.dtype)        # dummy, never read
    else:
        xt = x_p.reshape(B, nt, t_tile, F)
        zrow = jnp.zeros((B, 1, pad, F), x_p.dtype)
        top = jnp.concatenate([zrow, xt[:, :-1, t_tile - pad:, :]], axis=1)
        bot = jnp.concatenate([xt[:, 1:, :pad, :], zrow], axis=1)
        halos = jnp.concatenate([top, bot], axis=2)         # (B, nt, 2*pad, F)
    hrows = halos.shape[2]

    # Resident weights: (out, in, k) -> (k, in, out) -> (K*F, F) im2col layout, bf16.
    w2d = jnp.transpose(weight, (2, 1, 0)).reshape(K * F, F).astype(jnp.bfloat16)
    b2 = bias.reshape(1, F).astype(jnp.float32)

    kernel = functools.partial(_conv1d_kernel, K=K, pad=pad, t_tile=t_tile, F=F)

    out = pl.pallas_call(
        kernel,
        out_shape=jax.ShapeDtypeStruct((B, Tp, F), out_dtype),
        grid_spec=pltpu.PrefetchScalarGridSpec(
            num_scalar_prefetch=0,
            grid=(B, nt),
            in_specs=[
                pl.BlockSpec((pl.Squeezed(), t_tile, F), lambda b, t: (b, t, 0)),
                pl.BlockSpec((pl.Squeezed(), pl.Squeezed(), hrows, F),
                             lambda b, t: (b, t, 0, 0)),
                # Resident weight / bias blocks.  NOTE(perf review): for large F add
                # pipeline_mode=pl.Buffered(1) here to drop their second pipeline
                # buffer; at the small F this module targets the saving is a few
                # tens of KiB, so the default is kept for robustness.
                pl.BlockSpec((K * F, F), lambda b, t: (0, 0)),
                pl.BlockSpec((1, F), lambda b, t: (0, 0)),
            ],
            out_specs=pl.BlockSpec((pl.Squeezed(), t_tile, F), lambda b, t: (b, t, 0)),
            scratch_shapes=[pltpu.VMEM((t_tile, K * F), jnp.bfloat16)],
        ),
        compiler_params=pltpu.CompilerParams(
            dimension_semantics=("parallel", "parallel"),
            vmem_limit_bytes=32 * 1024 * 1024,   # > v5e's 16 MiB default; usage << budget
        ),
    )(x_p, halos, w2d, b2)

    return out if Tp == T else out[:, :T]


def _reference(x, weight, bias, kernel_size):
    # Pure-JAX reference of the same math (for correctness check).
    B, T, F = x.shape
    K = kernel_size
    pad = (K - 1) // 2
    x_pad = jnp.pad(x, ((0, 0), (pad, pad), (0, 0)))
    w_k = jnp.transpose(weight, (2, 1, 0))      # (K, F_in, F_out)
    acc = jnp.zeros((B, T, F), jnp.float32)
    for k in range(K):
        acc += jnp.einsum("btf,fo->bto", x_pad[:, k:k + T, :], w_k[k])
    return jnp.maximum(acc + bias[None, None, :], 0.0)


if __name__ == "__main__":
    B, T, F, K = 2, 16, 8, 7

    key = jax.random.PRNGKey(0)
    kx, kw, kb = jax.random.split(key, 3)

    x = jax.random.normal(kx, (B, T, F), dtype=jnp.float32)
    # Deterministic, PyTorch-like uniform init for Conv1d params.
    fan_in = F * K
    bound = 1.0 / (fan_in ** 0.5)
    weight = jax.random.uniform(kw, (F, F, K), jnp.float32, -bound, bound)  # (out, in, k)
    bias = jax.random.uniform(kb, (F,), jnp.float32, -bound, bound)

    # Default path: f32 output (module contract).
    out = conv_layer_forward(x, weight, bias, kernel_size=K)
    out = jax.block_until_ready(out)
    assert out.shape == (B, T, F) and out.dtype == jnp.float32

    # Tight check vs. a reference computed on bf16-rounded operands (the kernel
    # uses bf16 MXU operands with f32 accumulation and an f32 bias/ReLU epilogue).
    x_r = x.astype(jnp.bfloat16).astype(jnp.float32)
    w_r = weight.astype(jnp.bfloat16).astype(jnp.float32)
    ref_bf = _reference(x_r, w_r, bias, K)
    assert jnp.allclose(out, ref_bf, atol=2e-3, rtol=2e-3), "mismatch vs bf16-rounded reference"

    # Loose sanity check vs. the full-precision reference (bounds operand rounding).
    ref_f32 = _reference(x, weight, bias, K)
    assert jnp.allclose(out, ref_f32, atol=5e-2, rtol=5e-2), "mismatch vs f32 reference"

    # bf16-output variant (perf review: halves output HBM traffic).
    out_bf16 = jax.block_until_ready(
        conv_layer_forward(x, weight, bias, kernel_size=K, out_dtype=jnp.bfloat16))
    assert out_bf16.shape == (B, T, F) and out_bf16.dtype == jnp.bfloat16
    assert jnp.allclose(out_bf16.astype(jnp.float32), ref_bf, atol=2e-2, rtol=2e-2), \
        "mismatch in bf16-output path"

    print("KERNEL_OK")
</pallas_src>

<mosaic_0001>
module attributes {stable_mosaic.version = 11 : i64} {
  func.func @_conv1d_kernel(%arg0: i32, %arg1: i32, %arg2: memref<1x16x8xf32, #tpu.memory_space<vmem>>, %arg3: memref<1x1x6x8xf32, #tpu.memory_space<vmem>>, %arg4: memref<56x8xbf16, #tpu.memory_space<vmem>>, %arg5: memref<1x8xf32, #tpu.memory_space<vmem>>, %arg6: memref<1x16x8xf32, #tpu.memory_space<vmem>>, %arg7: memref<16x56xbf16, #tpu.memory_space<vmem>>) attributes {dimension_semantics = [#tpu.dimension_semantics<parallel>, #tpu.dimension_semantics<parallel>], iteration_bounds = array<i64: 2, 1>, scalar_prefetch = 0 : i64, scratch_operands = 1 : i64, tpu.core_type = #tpu.core_type<tc>, window_params = [{transform_indices = @transform_0, window_bounds = array<i64: 1, 16, 8>}, {transform_indices = @transform_1, window_bounds = array<i64: 1, 1, 6, 8>}, {pipeline_mode = #tpu.pipeline_mode<synchronous>, transform_indices = @transform_2, window_bounds = array<i64: 56, 8>}, {pipeline_mode = #tpu.pipeline_mode<synchronous>, transform_indices = @transform_3, window_bounds = array<i64: 1, 8>}, {transform_indices = @transform_4, window_bounds = array<i64: 1, 16, 8>}]} {
    %c0 = arith.constant 0 : index
    %c0_0 = arith.constant 0 : index
    %c0_1 = arith.constant 0 : index
    %0 = vector.load %arg2[%c0, %c0_0, %c0_1] : memref<1x16x8xf32, #tpu.memory_space<vmem>>, vector<1x16x8xf32>
    %1 = vector.shape_cast %0 : vector<1x16x8xf32> to vector<16x8xf32>
    %c3_i32 = arith.constant 3 : i32
    %2 = tpu.dynamic_rotate %1 by %c3_i32 dim 0 : vector<16x8xf32>, i32 -> vector<16x8xf32>
    %3 = arith.truncf %2 : vector<16x8xf32> to vector<16x8xbf16>
    %c0_2 = arith.constant 0 : index
    %c0_3 = arith.constant 0 : index
    %4 = vector.load %arg7[%c0_2, %c0_3] : memref<16x56xbf16, #tpu.memory_space<vmem>>, vector<16x8xbf16>
    tpu.vector_store %arg7[%c0_2, %c0_3], %3 {strides = array<i32>} : memref<16x56xbf16, #tpu.memory_space<vmem>>, vector<16x8xbf16>,
    %c0_4 = arith.constant 0 : index
    %c0_5 = arith.constant 0 : index
    %c0_6 = arith.constant 0 : index
    %c0_7 = arith.constant 0 : index
    %5 = vector.load %arg3[%c0_4, %c0_5, %c0_6, %c0_7] : memref<1x1x6x8xf32, #tpu.memory_space<vmem>>, vector<1x1x3x8xf32>
    %6 = vector.shape_cast %5 : vector<1x1x3x8xf32> to vector<3x8xf32>
    %7 = arith.truncf %6 : vector<3x8xf32> to vector<3x8xbf16>
    %c0_8 = arith.constant 0 : index
    %c0_9 = arith.constant 0 : index
    %8 = vector.load %arg7[%c0_8, %c0_9] : memref<16x56xbf16, #tpu.memory_space<vmem>>, vector<3x8xbf16>
    tpu.vector_store %arg7[%c0_8, %c0_9], %7 {strides = array<i32>} : memref<16x56xbf16, #tpu.memory_space<vmem>>, vector<3x8xbf16>,
    %c2_i32 = arith.constant 2 : i32
    %9 = tpu.dynamic_rotate %1 by %c2_i32 dim 0 : vector<16x8xf32>, i32 -> vector<16x8xf32>
    %10 = arith.truncf %9 : vector<16x8xf32> to vector<16x8xbf16>
    %c0_10 = arith.constant 0 : index
    %c8 = arith.constant 8 : index
    %11 = vector.load %arg7[%c0_10, %c8] : memref<16x56xbf16, #tpu.memory_space<vmem>>, vector<16x8xbf16>
    tpu.vector_store %arg7[%c0_10, %c8], %10 {strides = array<i32>} : memref<16x56xbf16, #tpu.memory_space<vmem>>, vector<16x8xbf16>,
    %c0_11 = arith.constant 0 : index
    %c0_12 = arith.constant 0 : index
    %c1 = arith.constant 1 : index
    %c0_13 = arith.constant 0 : index
    %12 = vector.load %arg3[%c0_11, %c0_12, %c1, %c0_13] : memref<1x1x6x8xf32, #tpu.memory_space<vmem>>, vector<1x1x2x8xf32>
    %13 = vector.shape_cast %12 : vector<1x1x2x8xf32> to vector<2x8xf32>
    %14 = arith.truncf %13 : vector<2x8xf32> to vector<2x8xbf16>
    %c0_14 = arith.constant 0 : index
    %c8_15 = arith.constant 8 : index
    %15 = vector.load %arg7[%c0_14, %c8_15] : memref<16x56xbf16, #tpu.memory_space<vmem>>, vector<2x8xbf16>
    tpu.vector_store %arg7[%c0_14, %c8_15], %14 {strides = array<i32>} : memref<16x56xbf16, #tpu.memory_space<vmem>>, vector<2x8xbf16>,
    %c1_i32 = arith.constant 1 : i32
    %16 = tpu.dynamic_rotate %1 by %c1_i32 dim 0 : vector<16x8xf32>, i32 -> vector<16x8xf32>
    %17 = arith.truncf %16 : vector<16x8xf32> to vector<16x8xbf16>
    %c0_16 = arith.constant 0 : index
    %c16 = arith.constant 16 : index
    %18 = vector.load %arg7[%c0_16, %c16] : memref<16x56xbf16, #tpu.memory_space<vmem>>, vector<16x8xbf16>
    tpu.vector_store %arg7[%c0_16, %c16], %17 {strides = array<i32>} : memref<16x56xbf16, #tpu.memory_space<vmem>>, vector<16x8xbf16>,
    %c0_17 = arith.constant 0 : index
    %c0_18 = arith.constant 0 : index
    %c2 = arith.constant 2 : index
    %c0_19 = arith.constant 0 : index
    %19 = vector.load %arg3[%c0_17, %c0_18, %c2, %c0_19] : memref<1x1x6x8xf32, #tpu.memory_space<vmem>>, vector<1x1x1x8xf32>
    %20 = vector.shape_cast %19 : vector<1x1x1x8xf32> to vector<1x8xf32>
    %21 = arith.truncf %20 : vector<1x8xf32> to vector<1x8xbf16>
    %c0_20 = arith.constant 0 : index
    %c16_21 = arith.constant 16 : index
    %22 = vector.load %arg7[%c0_20, %c16_21] : memref<16x56xbf16, #tpu.memory_space<vmem>>, vector<1x8xbf16>
    tpu.vector_store %arg7[%c0_20, %c16_21], %21 {strides = array<i32>} : memref<16x56xbf16, #tpu.memory_space<vmem>>, vector<1x8xbf16>,
    %23 = arith.truncf %1 : vector<16x8xf32> to vector<16x8xbf16>
    %c0_22 = arith.constant 0 : index
    %c24 = arith.constant 24 : index
    %24 = vector.load %arg7[%c0_22, %c24] : memref<16x56xbf16, #tpu.memory_space<vmem>>, vector<16x8xbf16>
    tpu.vector_store %arg7[%c0_22, %c24], %23 {strides = array<i32>} : memref<16x56xbf16, #tpu.memory_space<vmem>>, vector<16x8xbf16>,
    %c15_i32 = arith.constant 15 : i32
    %25 = tpu.dynamic_rotate %1 by %c15_i32 dim 0 : vector<16x8xf32>, i32 -> vector<16x8xf32>
    %26 = arith.truncf %25 : vector<16x8xf32> to vector<16x8xbf16>
    %c0_23 = arith.constant 0 : index
    %c32 = arith.constant 32 : index
    %27 = vector.load %arg7[%c0_23, %c32] : memref<16x56xbf16, #tpu.memory_space<vmem>>, vector<16x8xbf16>
    tpu.vector_store %arg7[%c0_23, %c32], %26 {strides = array<i32>} : memref<16x56xbf16, #tpu.memory_space<vmem>>, vector<16x8xbf16>,
    %c0_24 = arith.constant 0 : index
    %c0_25 = arith.constant 0 : index
    %c3 = arith.constant 3 : index
    %c0_26 = arith.constant 0 : index
    %28 = vector.load %arg3[%c0_24, %c0_25, %c3, %c0_26] : memref<1x1x6x8xf32, #tpu.memory_space<vmem>>, vector<1x1x1x8xf32>
    %29 = vector.shape_cast %28 : vector<1x1x1x8xf32> to vector<1x8xf32>
    %30 = arith.truncf %29 : vector<1x8xf32> to vector<1x8xbf16>
    %c15 = arith.constant 15 : index
    %c32_27 = arith.constant 32 : index
    %31 = vector.load %arg7[%c15, %c32_27] : memref<16x56xbf16, #tpu.memory_space<vmem>>, vector<1x8xbf16>
    tpu.vector_store %arg7[%c15, %c32_27], %30 {strides = array<i32>} : memref<16x56xbf16, #tpu.memory_space<vmem>>, vector<1x8xbf16>,
    %c14_i32 = arith.constant 14 : i32
    %32 = tpu.dynamic_rotate %1 by %c14_i32 dim 0 : vector<16x8xf32>, i32 -> vector<16x8xf32>
    %33 = arith.truncf %32 : vector<16x8xf32> to vector<16x8xbf16>
    %c0_28 = arith.constant 0 : index
    %c40 = arith.constant 40 : index
    %34 = vector.load %arg7[%c0_28, %c40] : memref<16x56xbf16, #tpu.memory_space<vmem>>, vector<16x8xbf16>
    tpu.vector_store %arg7[%c0_28, %c40], %33 {strides = array<i32>} : memref<16x56xbf16, #tpu.memory_space<vmem>>, vector<16x8xbf16>,
    %c0_29 = arith.constant 0 : index
    %c0_30 = arith.constant 0 : index
    %c3_31 = arith.constant 3 : index
    %c0_32 = arith.constant 0 : index
    %35 = vector.load %arg3[%c0_29, %c0_30, %c3_31, %c0_32] : memref<1x1x6x8xf32, #tpu.memory_space<vmem>>, vector<1x1x2x8xf32>
    %36 = vector.shape_cast %35 : vector<1x1x2x8xf32> to vector<2x8xf32>
    %37 = arith.truncf %36 : vector<2x8xf32> to vector<2x8xbf16>
    %c14 = arith.constant 14 : index
    %c40_33 = arith.constant 40 : index
    %38 = vector.load %arg7[%c14, %c40_33] : memref<16x56xbf16, #tpu.memory_space<vmem>>, vector<2x8xbf16>
    tpu.vector_store %arg7[%c14, %c40_33], %37 {strides = array<i32>} : memref<16x56xbf16, #tpu.memory_space<vmem>>, vector<2x8xbf16>,
    %c13_i32 = arith.constant 13 : i32
    %39 = tpu.dynamic_rotate %1 by %c13_i32 dim 0 : vector<16x8xf32>, i32 -> vector<16x8xf32>
    %40 = arith.truncf %39 : vector<16x8xf32> to vector<16x8xbf16>
    %c0_34 = arith.constant 0 : index
    %c48 = arith.constant 48 : index
    %41 = vector.load %arg7[%c0_34, %c48] : memref<16x56xbf16, #tpu.memory_space<vmem>>, vector<16x8xbf16>
    tpu.vector_store %arg7[%c0_34, %c48], %40 {strides = array<i32>} : memref<16x56xbf16, #tpu.memory_space<vmem>>, vector<16x8xbf16>,
    %c0_35 = arith.constant 0 : index
    %c0_36 = arith.constant 0 : index
    %c3_37 = arith.constant 3 : index
    %c0_38 = arith.constant 0 : index
    %42 = vector.load %arg3[%c0_35, %c0_36, %c3_37, %c0_38] : memref<1x1x6x8xf32, #tpu.memory_space<vmem>>, vector<1x1x3x8xf32>
    %43 = vector.shape_cast %42 : vector<1x1x3x8xf32> to vector<3x8xf32>
    %44 = arith.truncf %43 : vector<3x8xf32> to vector<3x8xbf16>
    %c13 = arith.constant 13 : index
    %c48_39 = arith.constant 48 : index
    %45 = vector.load %arg7[%c13, %c48_39] : memref<16x56xbf16, #tpu.memory_space<vmem>>, vector<3x8xbf16>
    tpu.vector_store %arg7[%c13, %c48_39], %44 {strides = array<i32>} : memref<16x56xbf16, #tpu.memory_space<vmem>>, vector<3x8xbf16>,
    %c0_40 = arith.constant 0 : index
    %c0_41 = arith.constant 0 : index
    %46 = vector.load %arg7[%c0_40, %c0_41] : memref<16x56xbf16, #tpu.memory_space<vmem>>, vector<16x56xbf16>
    %c0_42 = arith.constant 0 : index
    %c0_43 = arith.constant 0 : index
    %47 = vector.load %arg4[%c0_42, %c0_43] : memref<56x8xbf16, #tpu.memory_space<vmem>>, vector<56x8xbf16>
    %cst = arith.constant dense<0.000000e+00> : vector<16x8xf32>
    %48 = tpu.matmul %46, %47, %cst {dimension_numbers = #tpu.dot_dimension_numbers<[1], [0], [0], [1], [0, 0, 1, 1], [], []>} : vector<16x56xbf16>, vector<56x8xbf16>, vector<16x8xf32> -> vector<16x8xf32>
    %c0_44 = arith.constant 0 : index
    %c0_45 = arith.constant 0 : index
    %49 = vector.load %arg5[%c0_44, %c0_45] : memref<1x8xf32, #tpu.memory_space<vmem>>, vector<1x8xf32>
    %50 = vector.broadcast %49 : vector<1x8xf32> to vector<16x8xf32>
    %51 = arith.addf %48, %50 : vector<16x8xf32>
    %cst_46 = arith.constant 0.000000e+00 : f32
    %52 = vector.broadcast %cst_46 : f32 to vector<16x8xf32>
    %53 = arith.maximumf %51, %52 : vector<16x8xf32>
    %c0_47 = arith.constant 0 : index
    %c0_48 = arith.constant 0 : index
    %c0_49 = arith.constant 0 : index
    %54 = vector.load %arg6[%c0_47, %c0_48, %c0_49] : memref<1x16x8xf32, #tpu.memory_space<vmem>>, vector<1x16x8xf32>
    %55 = vector.shape_cast %54 : vector<1x16x8xf32> to vector<16x8xf32>
    %56 = vector.shape_cast %53 : vector<16x8xf32> to vector<1x16x8xf32>
    tpu.vector_store %arg6[%c0_47, %c0_48, %c0_49], %56 {strides = array<i32>} : memref<1x16x8xf32, #tpu.memory_space<vmem>>, vector<1x16x8xf32>,
    return
  }
  func.func @transform_0(%arg0: i32, %arg1: i32) -> (i32, i32, i32) {
    %c0_i32 = arith.constant 0 : i32
    %c0_i32_0 = arith.constant 0 : i32
    return %arg0, %arg1, %c0_i32 : i32, i32, i32
  }
  func.func @transform_1(%arg0: i32, %arg1: i32) -> (i32, i32, i32, i32) {
    %c0_i32 = arith.constant 0 : i32
    %c0_i32_0 = arith.constant 0 : i32
    %c0_i32_1 = arith.constant 0 : i32
    return %arg0, %arg1, %c0_i32, %c0_i32_0 : i32, i32, i32, i32
  }
  func.func @transform_2(%arg0: i32, %arg1: i32) -> (i32, i32) {
    %c0_i32 = arith.constant 0 : i32
    %c0_i32_0 = arith.constant 0 : i32
    %c0_i32_1 = arith.constant 0 : i32
    return %c0_i32, %c0_i32_0 : i32, i32
  }
  func.func @transform_3(%arg0: i32, %arg1: i32) -> (i32, i32) {
    %c0_i32 = arith.constant 0 : i32
    %c0_i32_0 = arith.constant 0 : i32
    %c0_i32_1 = arith.constant 0 : i32
    return %c0_i32, %c0_i32_0 : i32, i32
  }
  func.func @transform_4(%arg0: i32, %arg1: i32) -> (i32, i32, i32) {
    %c0_i32 = arith.constant 0 : i32
    %c0_i32_0 = arith.constant 0 : i32
    return %arg0, %arg1, %c0_i32 : i32, i32, i32
  }
}

</mosaic_0001>

<llo_original>
// kernel: tpu_custom_call.1
$region0: #{tpu_custom_call.1}
  #allocation0 [shape = 'u32[]', space=smem, size = 0x4, offset = 0x4, fixed_abs, tag = 'smem constant byte address 0x4 - core index']
  #allocation1 [shape = 'u32[144,128]{1,0:T(1,128)}', space=vmem, size = 0x12000, scoped, tag = 'internal scratch']
  #allocation2 [shape = 'bf16[16,56]{1,0:T(16,128)(2,1)}', space=vmem, size = 0x1000, scoped, tag = 'scratch operand']
  %s0 = inlined_call_operand.vmem [shape: f32[2,16,8], index: 0, kind: input, shape index: {}]
  %s1 = inlined_call_operand.vmem [shape: f32[2,1,6,8], index: 1, kind: input, shape index: {}]
  %s2 = inlined_call_operand.vmem [shape: bf16[56,8], index: 2, kind: input, shape index: {}]
  %s3 = inlined_call_operand.vmem [shape: f32[1,8], index: 3, kind: input, shape index: {}]
  %s4 = inlined_call_operand.vmem [shape: f32[2,16,8], index: 4, kind: output, shape index: {}]
  %s5 = sld [smem:[#allocation0]]
  $region49: #{tpu_custom_call.1} parent=0
    _
  %s7 = ssub.s32 1, %s5
  %s8 = scalar_select 0, %s7, %s5
  loop: start=0, step=1, limit=4
  $region2: #{tpu_custom_call.1} parent=0 // loop_pre_header
    _
  $region3: #{tpu_custom_call.1} parent=0 // loop_header
    %s10 = sphi 0, %s14
    %p11 = scmp.ge.s32.totalorder %s10, 4
    %s17 = sphi 0, %s29
    %s18 = sphi 0, %s25
    %s19 = sphi 0, %s17
    %s20 = sphi 0, %s18
    %s21 = sphi 0, %s19
    %s22 = sphi 0, %s20
    %s34 = sphi 0, %s36
    %s37 = sphi 0, %s34
    %s38 = sphi 0, %s37
    %s54 = sphi 0, %s38
    %s62 = sphi 0, %s64
    %s65 = sphi 0, %s62
    %s66 = sphi 0, %s65
    %s82 = sphi 0, %s66
    %s86 = sphi 0, %s86
    %s88 = sphi 0, %s86
    %s89 = sphi 0, %s88
    %s103 = sphi 0, %s89
    %s107 = sphi 0, %s107
    %s109 = sphi 0, %s107
    %s110 = sphi 0, %s109
    %s124 = sphi 0, %s110
    %s132 = sphi 0, %s134
    %s135 = sphi 0, %s132
    %s136 = sphi 0, %s135
    %s152 = sphi 0, %s136
  $region4: #{tpu_custom_call.1} parent=0 // loop_header_branch
    %13 = sbr.rel (%p11) target = $region8
  $region5: #{tpu_custom_call.1} parent=0 // loop_body
    %s15 = ssub.s32 %s10, 1
    %s16 = ssub.s32 %s10, 2
    %s23 = sadd.s32 1, %s18
    %p24 = scmp.ge.s32.totalorder %s23, 1
    %s25 = scalar_select %p24, 0, %s23
    %s26 = sadd.s32 1, %s17
    %s27 = scalar_select %p24, %s26, %s17
    %p28 = scmp.ge.s32.totalorder %s27, 2
    %s29 = scalar_select %p28, 0, %s27
    %s30 = ssub.s32 %s17, %s29
    %s31 = ssub.s32 %s18, %s25
    %s32 = sor.u32 %s30, %s31
    %p33 = scmp.eq.s32.totalorder %s32, 0
    %s35 = sadd.s32 %s34, 1
    %s36 = scalar_select %p33, %s34, %s35
    %p39 = pneg %p33
    %p40 = scmp.eq.s32.totalorder %s10, 1
    %p41 = por %p39, %p40
    %p42 = scmp.ne.s32.totalorder %s34, %s37
    %p43 = scmp.eq.s32.totalorder %s10, 0
    %p44 = por %p42, %p43
    %p45 = scmp.ne.s32.totalorder %s34, %s37
    %p46 = scmp.eq.s32.totalorder %s15, 1
    %p47 = por %p45, %p46
    %p48 = scmp.ne.s32.totalorder %s37, %s38
    %p49 = scmp.eq.s32.totalorder %s15, 0
    %p50 = por %p48, %p49
    %p51 = scmp.ne.s32.totalorder %s37, %s38
    %p52 = scmp.eq.s32.totalorder %s16, 1
    %p53 = por %p51, %p52
    %p55 = scmp.ne.s32.totalorder %s38, %s54
    %p56 = scmp.eq.s32.totalorder %s16, 0
    %p57 = por %p55, %p56
    %s58 = ssub.s32 %s17, %s29
    %s59 = ssub.s32 %s18, %s25
    %s60 = sor.u32 %s58, %s59
    %p61 = scmp.eq.s32.totalorder %s60, 0
    %s63 = sadd.s32 %s62, 1
    %s64 = scalar_select %p61, %s62, %s63
    %p67 = pneg %p61
    %p68 = scmp.eq.s32.totalorder %s10, 1
    %p69 = por %p67, %p68
    %p70 = scmp.ne.s32.totalorder %s62, %s65
    %p71 = scmp.eq.s32.totalorder %s10, 0
    %p72 = por %p70, %p71
    %p73 = scmp.ne.s32.totalorder %s62, %s65
    %p74 = scmp.eq.s32.totalorder %s15, 1
    %p75 = por %p73, %p74
    %p76 = scmp.ne.s32.totalorder %s65, %s66
    %p77 = scmp.eq.s32.totalorder %s15, 0
    %p78 = por %p76, %p77
    %p79 = scmp.ne.s32.totalorder %s65, %s66
    %p80 = scmp.eq.s32.totalorder %s16, 1
    %p81 = por %p79, %p80
    %p83 = scmp.ne.s32.totalorder %s66, %s82
    %p84 = scmp.eq.s32.totalorder %s16, 0
    %p85 = por %p83, %p84
    %s87 = sadd.s32 %s86, 1
    %p90 = scmp.eq.s32.totalorder %s10, 1
    %p91 = scmp.ne.s32.totalorder %s86, %s88
    %p92 = scmp.eq.s32.totalorder %s10, 0
    %p93 = por %p91, %p92
    %p94 = scmp.ne.s32.totalorder %s86, %s88
    %p95 = scmp.eq.s32.totalorder %s15, 1
    %p96 = por %p94, %p95
    %p97 = scmp.ne.s32.totalorder %s88, %s89
    %p98 = scmp.eq.s32.totalorder %s15, 0
    %p99 = por %p97, %p98
    %p100 = scmp.ne.s32.totalorder %s88, %s89
    %p101 = scmp.eq.s32.totalorder %s16, 1
    %p102 = por %p100, %p101
    %p104 = scmp.ne.s32.totalorder %s89, %s103
    %p105 = scmp.eq.s32.totalorder %s16, 0
    %p106 = por %p104, %p105
    %s108 = sadd.s32 %s107, 1
    %p111 = scmp.eq.s32.totalorder %s10, 1
    %p112 = scmp.ne.s32.totalorder %s107, %s109
    %p113 = scmp.eq.s32.totalorder %s10, 0
    %p114 = por %p112, %p113
    %p115 = scmp.ne.s32.totalorder %s107, %s109
    %p116 = scmp.eq.s32.totalorder %s15, 1
    %p117 = por %p115, %p116
    %p118 = scmp.ne.s32.totalorder %s109, %s110
    %p119 = scmp.eq.s32.totalorder %s15, 0
    %p120 = por %p118, %p119
    %p121 = scmp.ne.s32.totalorder %s109, %s110
    %p122 = scmp.eq.s32.totalorder %s16, 1
    %p123 = por %p121, %p122
    %p125 = scmp.ne.s32.totalorder %s110, %s124
    %p126 = scmp.eq.s32.totalorder %s16, 0
    %p127 = por %p125, %p126
    %s128 = ssub.s32 %s17, %s29
    %s129 = ssub.s32 %s18, %s25
    %s130 = sor.u32 %s128, %s129
    %p131 = scmp.eq.s32.totalorder %s130, 0
    %s133 = sadd.s32 %s132, 1
    %s134 = scalar_select %p131, %s132, %s133
    %p137 = pneg %p131
    %p138 = scmp.eq.s32.totalorder %s10, 1
    %p139 = por %p137, %p138
    %p140 = scmp.ne.s32.totalorder %s132, %s135
    %p141 = scmp.eq.s32.totalorder %s10, 0
    %p142 = por %p140, %p141
    %p143 = scmp.ne.s32.totalorder %s132, %s135
    %p144 = scmp.eq.s32.totalorder %s15, 1
    %p145 = por %p143, %p144
    %p146 = scmp.ne.s32.totalorder %s135, %s136
    %p147 = scmp.eq.s32.totalorder %s15, 0
    %p148 = por %p146, %p147
    %p149 = scmp.ne.s32.totalorder %s135, %s136
    %p150 = scmp.eq.s32.totalorder %s16, 1
    %p151 = por %p149, %p150
    %p153 = scmp.ne.s32.totalorder %s136, %s152
    %p154 = scmp.eq.s32.totalorder %s16, 0
    %p155 = por %p153, %p154
    %p156 = scmp.le.s32.totalorder 1, %s10
    %p157 = scmp.lt.s32.totalorder %s10, 3
    %p158 = pnand %p156, %p157
    %p159 = pneg %p158
    // Predicated region
    $region9: #{tpu_custom_call.1} parent=5 // pred_check
      _
    $region10: #{tpu_custom_call.1} parent=5 // pred_check_branch
      %161 = sbr.rel (%p158) target = $region12
    $region11: #{tpu_custom_call.1} parent=5 // pred_region
      %s162 = ssub.s32 %s10, 1
      // Predicated region
      $region13: #{tpu_custom_call.1} parent=11 // pred_check
        %p163 = pneg %p99
      $region14: #{tpu_custom_call.1} parent=11 // pred_check_branch
        %165 = sbr.rel (%p163) target = $region16
      $region15: #{tpu_custom_call.1} parent=11 // pred_region
        _
      $region16: #{tpu_custom_call.1} parent=11 // pred_fallthru
        _
      // Predicated region
      $region17: #{tpu_custom_call.1} parent=11 // pred_check
        %p166 = pneg %p120
      $region18: #{tpu_custom_call.1} parent=11 // pred_check_branch
        %168 = sbr.rel (%p166) target = $region20
      $region19: #{tpu_custom_call.1} parent=11 // pred_region
        _
      $region20: #{tpu_custom_call.1} parent=11 // pred_fallthru
        _
    $region12: #{tpu_custom_call.1} parent=5 // pred_fallthru
      _
    %p169 = scmp.lt.s32.totalorder %s10, 2
    // Predicated region
    $region21: #{tpu_custom_call.1} parent=5 // pred_check
      %p170 = pneg %p169
    $region22: #{tpu_custom_call.1} parent=5 // pred_check_branch
      %172 = sbr.rel (%p170) target = $region24
    $region23: #{tpu_custom_call.1} parent=5 // pred_region
      // Predicated region
      $region25: #{tpu_custom_call.1} parent=23 // pred_check
        %p173 = pneg %p44
      $region26: #{tpu_custom_call.1} parent=23 // pred_check_branch
        %175 = sbr.rel (%p173) target = $region28
      $region27: #{tpu_custom_call.1} parent=23 // pred_region
        %s176 = smul.u32 2, %s18
        %p177 = scmp.lt.s32.totalorder %s17, 1
        %s178 = scalar_select %p177, %s17, 1
        %p179 = scmp.lt.s32.totalorder %s176, 1
        %s180 = scalar_select %p179, %s176, 1
        %s181 = smul.addr %s178, 2
        %s182 = sadd.s32 %s180, %s181
        %s183 = smul.addr %s182, 8
        %s184 = scalar_lea.vmem %s0, %s183
        %s185 = smul.u32 2, %s18
      $region28: #{tpu_custom_call.1} parent=23 // pred_fallthru
        _
      // Predicated region
      $region29: #{tpu_custom_call.1} parent=23 // pred_check
        %p186 = pneg %p72
      $region30: #{tpu_custom_call.1} parent=23 // pred_check_branch
        %188 = sbr.rel (%p186) target = $region32
      $region31: #{tpu_custom_call.1} parent=23 // pred_region
        %p189 = scmp.lt.s32.totalorder %s17, 1
        %s190 = scalar_select %p189, %s17, 1
        %p191 = scmp.lt.s32.totalorder %s18, 0
        %s192 = scalar_select %p191, %s18, 0
        %s193 = sadd.s32 %s192, %s190
        %s194 = smul.addr %s193, 8
        %s195 = scalar_lea.vmem %s1, %s194
      $region32: #{tpu_custom_call.1} parent=23 // pred_fallthru
        _
    $region24: #{tpu_custom_call.1} parent=5 // pred_fallthru
      _
    %p196 = scmp.le.s32.totalorder 1, %s10
    %p197 = scmp.lt.s32.totalorder %s10, 3
    %p198 = pnand %p196, %p197
    %p199 = pneg %p198
    // Predicated region
    $region33: #{tpu_custom_call.1} parent=5 // pred_check
      _
    $region34: #{tpu_custom_call.1} parent=5 // pred_check_branch
      %201 = sbr.rel (%p198) target = $region36
    $region35: #{tpu_custom_call.1} parent=5 // pred_region
      %s202 = ssub.s32 %s10, 1
      %s203 = smul.u32 2, %s20
      %p204 = scmp.lt.s32.totalorder %s19, 1
      %s205 = scalar_select %p204, %s19, 1
      %p206 = scmp.lt.s32.totalorder %s203, 1
      %s207 = scalar_select %p206, %s203, 1
      %s208 = smul.addr %s205, 2
      %s209 = sadd.s32 %s207, %s208
      %s210 = smul.addr %s209, 8
      %s211 = scalar_lea.vmem %s0, %s210
      %p212 = pneg %p50
      %p213 = pneg %p47
      %p214 = scmp.lt.s32.totalorder %s19, 1
      %s215 = scalar_select %p214, %s19, 1
      %p216 = scmp.lt.s32.totalorder %s20, 0
      %s217 = scalar_select %p216, %s20, 0
      %s218 = sadd.s32 %s217, %s215
      %s219 = smul.addr %s218, 8
      %s220 = scalar_lea.vmem %s1, %s219
      %p221 = pneg %p78
      %p222 = pneg %p75
      %p223 = pneg %p99
      %p224 = pneg %p96
      %p225 = pneg %p120
      %p226 = pneg %p117
      %p227 = pneg %p148
      %p228 = pneg %p145
      %s229 = smul.u32 2, %s20
      %p230 = scmp.lt.s32.totalorder %s19, 1
      %s231 = scalar_select %p230, %s19, 1
      %p232 = scmp.lt.s32.totalorder %s229, 1
      %s233 = scalar_select %p232, %s229, 1
      %s234 = smul.addr %s231, 2
      %s235 = sadd.s32 %s233, %s234
      %s236 = smul.addr %s235, 8
      %s237 = scalar_lea.vmem %s4, %s236
      %s238 = smul.u32 2, %s20
      %p239 = scmp.lt.s32.totalorder %s19, 1
      %s240 = scalar_select %p239, %s19, 1
      %p241 = scmp.lt.s32.totalorder %s238, 1
      %s242 = scalar_select %p241, %s238, 1
      %s243 = smul.addr %s240, 2
      %s244 = sadd.s32 %s242, %s243
      %s245 = smul.addr %s244, 8
      %s246 = scalar_lea.vmem %s0, %s245
      %s247 = smul.u32 2, %s20
      %p248 = scmp.lt.s32.totalorder %s19, 1
      %s249 = scalar_select %p248, %s19, 1
      %p250 = scmp.lt.s32.totalorder %s20, 0
      %s251 = scalar_select %p250, %s20, 0
      %s252 = sadd.s32 %s251, %s249
      %s253 = smul.addr %s252, 8
      %s254 = scalar_lea.vmem %s1, %s253
      %s255 = smul.u32 2, %s20
      %p256 = scmp.lt.s32.totalorder %s19, 1
      %s257 = scalar_select %p256, %s19, 1
      %p258 = scmp.lt.s32.totalorder %s255, 1
      %s259 = scalar_select %p258, %s255, 1
      %s260 = smul.addr %s257, 2
      %s261 = sadd.s32 %s259, %s260
      %s262 = smul.addr %s261, 8
      %s263 = scalar_lea.vmem %s4, %s262
      %s264 = smul.u32 2, %s20
      %v266 = vld [vmem:[%s246] sm:$0xff]
      %v267 = vld [vmem:[%s246 + $0x8] sm:$0xff]
      %v268 = vrot.slane %v266, 5
      %v269 = vrot.slane %v267, 5
      %v270 = vlaneseq
      %v271 = vshrl.u32 %v270, 7
      %vm272 = vcmp.lt.s32.totalorder %v271, 3
      %v273 = vsel %vm272, %v268, %v269
      %v274 = vsel %vm272, %v269, %v268
      %v275 = vpack.c.bf16 %v273, %v274
      %vm276 = vcmask 64512
      %277 = vst.msk [vmem:[#allocation2] sm:$0xff] %vm276, %v275
      %v278 = vld [vmem:[%s254] sm:$0x7]
      %v279 = vpack.c.bf16 %v278, %v278
      %vm280 = vcmask 58368
      %vm281 = vsmask.f32 1280
      %vm282 = vmand %vm280, %vm281
      %v283 = vld [vmem:[#allocation2] sm:$0x3]
      %v284 = vsel %vm282, %v279, %v283
      %285 = vst [vmem:[#allocation2] sm:$0x3] %v284
      %v286 = vrot.slane %v266, 6
      %v287 = vrot.slane %v267, 6
      %vm288 = vcmp.lt.s32.totalorder %v271, 2
      %v289 = vsel %vm288, %v286, %v287
      %v290 = vsel %vm288, %v287, %v286
      %v291 = vpack.c.bf16 %v289, %v290
      %293 = vrot.lane.b32.xlu0 %v291, 8
      %v294 = vpop.permute.xlu0 %293
      %vm296 = vcmask 130112
      %297 = vst.msk [vmem:[#allocation2] sm:$0xff] %vm296, %v294
      %v298 = vld [vmem:[%s254 + $0x1] sm:$0x3]
      %v299 = vpack.c.bf16 %v298, %v298
      %301 = vrot.lane.b32.xlu0 %v299, 8
      %v302 = vpop.permute.xlu0 %301
      %vm304 = vcmask 122944
      %305 = vst.msk [vmem:[#allocation2] sm:$0x1] %vm304, %v302
      %v306 = vrot.slane %v266, 7
      %v307 = vrot.slane %v267, 7
      %vm308 = vcmp.lt.s32.totalorder %v271, 1
      %v309 = vsel %vm308, %v306, %v307
      %v310 = vsel %vm308, %v307, %v306
      %v311 = vpack.c.bf16 %v309, %v310
      %313 = vrot.lane.b32.xlu0 %v311, 16
      %v314 = vpop.permute.xlu0 %313
      %vm316 = vcmask 195712
      %317 = vst.msk [vmem:[#allocation2] sm:$0xff] %vm316, %v314
      %v318 = vld [vmem:[%s254 + $0x2] sm:$0x1]
      %v319 = vpack.c.bf16 %v318, %v318
      %321 = vrot.lane.b32.xlu0 %v319, 16
      %v322 = vpop.permute.xlu0 %321
      %vm324 = vcmask 188544
      %vm325 = vsmask.f32 256
      %vm326 = vmand %vm324, %vm325
      %v327 = vld [vmem:[#allocation2] sm:$0x1]
      %v328 = vsel %vm326, %v322, %v327
      %329 = vst [vmem:[#allocation2] sm:$0x1] %v328
      %v330 = vpack.c.bf16 %v267, %v266
      %332 = vrot.lane.b32.xlu0 %v330, 24
      %v333 = vpop.permute.xlu0 %332
      %vm335 = vcmask 261312
      %336 = vst.msk [vmem:[#allocation2] sm:$0xff] %vm335, %v333
      %v337 = vrot.slane %v266, 1
      %v338 = vrot.slane %v267, 1
      %vm339 = vcmp.lt.s32.totalorder %v271, 7
      %v340 = vsel %vm339, %v337, %v338
      %v341 = vsel %vm339, %v338, %v337
      %v342 = vpack.c.bf16 %v341, %v340
      %344 = vrot.lane.b32.xlu0 %v342, 32
      %v345 = vpop.permute.xlu0 %344
      %vm347 = vcmask 326912
      %348 = vst.msk [vmem:[#allocation2] sm:$0xff] %vm347, %v345
      %v349 = vld [vmem:[%s254 + $0x3] sm:$0x1]
      %v350 = vpack.c.bf16 %v349, %v349
      %v352 = vshll.u32 %v350, 16
      %v354 = vrot.slane %v352, 1
      %355 = vrot.lane.b32.xlu0 %v354, 32
      %v356 = vpop.permute.xlu0 %355
      %vm358 = vcmask 326919
      %vm359 = vsmask.f32 7966
      %vm360 = vmand %vm358, %vm359
      %v361 = vld [vmem:[#allocation2] sm:$0x80]
      %v362 = vsel %vm360, %v356, %v361
      %363 = vst [vmem:[#allocation2] sm:$0x80] %v362
      %v364 = vrot.slane %v266, 2
      %v365 = vrot.slane %v267, 2
      %vm366 = vcmp.lt.s32.totalorder %v271, 6
      %v367 = vsel %vm366, %v364, %v365
      %v368 = vsel %vm366, %v365, %v364
      %v369 = vpack.c.bf16 %v368, %v367
      %371 = vrot.lane.b32.xlu0 %v369, 40
      %v372 = vpop.permute.xlu0 %371
      %vm374 = vcmask 392512
      %375 = vst.msk [vmem:[#allocation2] sm:$0xff] %vm374, %v372
      %v376 = vld [vmem:[%s254 + $0x3] sm:$0x3]
      %v377 = vpack.c.bf16 %v376, %v376
      %v379 = vrot.slane %v377, 1
      %380 = vrot.lane.b32.xlu0 %v379, 40
      %v381 = vpop.permute.xlu0 %380
      %vm383 = vcmask 392519
      %384 = vst.msk [vmem:[#allocation2] sm:$0x80] %vm383, %v381
      %v385 = vrot.slane %v266, 3
      %v386 = vrot.slane %v267, 3
      %vm387 = vcmp.lt.s32.totalorder %v271, 5
      %v388 = vsel %vm387, %v385, %v386
      %v389 = vsel %vm387, %v386, %v385
      %v390 = vpack.c.bf16 %v389, %v388
      %392 = vrot.lane.b32.xlu0 %v390, 48
      %v393 = vpop.permute.xlu0 %392
      %vm395 = vcmask 458112
      %396 = vst.msk [vmem:[#allocation2] sm:$0xff] %vm395, %v393
      %v397 = vld [vmem:[%s254 + $0x3] sm:$0x7]
      %v398 = vpack.c.bf16 %v397, %v397
      %v400 = vshrl.u32 %v398, 16
      %v402 = vrot.slane %v400, 1
      %v403 = vshll.u32 %v398, 16
      %v405 = vrot.slane %v403, 2
      %v406 = vor.u32 %v402, %v405
      %407 = vrot.lane.b32.xlu0 %v406, 48
      %v408 = vpop.permute.xlu0 %407
      %vm410 = vcmask 458118
      %vm411 = vsmask.f32 7962
      %vm412 = vmand %vm410, %vm411
      %v413 = vld [vmem:[#allocation2] sm:$0xc0]
      %v414 = vsel %vm412, %v408, %v413
      %415 = vst [vmem:[#allocation2] sm:$0xc0] %v414
      %v416 = vld [vmem:[#allocation2] sm:$0xff]
      %v417 = vld [vmem:[%s2] sm:$0xf]
      %v418 = vld [vmem:[%s2 + $0x4] sm:$0xf]
      %v419 = vld [vmem:[%s2 + $0x8] sm:$0xf]
      %v420 = vld [vmem:[%s2 + $0xc] sm:$0xf]
      %v421 = vld [vmem:[%s2 + $0x10] sm:$0xf]
      %v422 = vld [vmem:[%s2 + $0x14] sm:$0xf]
      %v423 = vld [vmem:[%s2 + $0x18] sm:$0xf]
      %v424 = vld [vmem:[%s3] sm:$0x1]
      %v426 = vlaneseq
      %v427 = vshrl.u32 %v426, 7
      %v428 = vsub.s32 0, %v427
      %v429 = vrot.slane %v424, %v428
      %v438 = vunpack.c.l.b16 %v417
      %v439 = vunpack.c.l.b16 %v418
      %v440 = vunpack.c.l.b16 %v419
      %v441 = vunpack.c.l.b16 %v420
      %v442 = vunpack.c.l.b16 %v421
      %v443 = vunpack.c.l.b16 %v422
      %v444 = vunpack.c.l.b16 %v423
      %v445 = vpack.c.b16 %v439, %v438
      %v446 = vpack.c.b16 %v441, %v440
      %v447 = vpack.c.b16 %v443, %v442
      %v448 = vpack.c.b16 %v444, %v444
      %vm452 = vcmask 457728
      %v454 = vsel %vm452, %v416, 0
      %vm456 = vcmask 1043456
      %v458 = vsel %vm456, %v448, 0
      %460 = vmatprep.subr.bf16.mxu0 0
      %461 = vmatpush1.bf16.msra.mxu0 %v445
      %462 = vmatprep.subr.bf16.mxu0 0
      %463 = vmatpush1.bf16.msra.mxu0 %v446
      %464 = vmatprep.subr.bf16.mxu0 0
      %465 = vmatpush1.bf16.msra.mxu0 %v447
      %466 = vmatprep.subr.bf16.mxu0 0
      %467 = vmatpush1.bf16.msra.mxu0 %v458
      %468 = vmatprep.subr.bf16.mxu0 0
      %469 = vmatpush1.bf16.msra.mxu0 0
      %470 = vmatprep.subr.bf16.mxu0 0
      %471 = vmatpush1.bf16.msra.mxu0 0
      %472 = vmatprep.subr.bf16.mxu0 0
      %473 = vmatpush1.bf16.msra.mxu0 0
      %474 = vmatprep.subr.bf16.mxu0 0
      %475 = vmatpush1.bf16.msra.mxu0 0
      %476 = vmatprep.subr.bf16.mxu0 0
      %477 = vmatpush1.bf16.msra.mxu0 0
      %478 = vmatprep.subr.bf16.mxu0 0
      %479 = vmatpush1.bf16.msra.mxu0 0
      %480 = vmatprep.subr.bf16.mxu0 0
      %481 = vmatpush1.bf16.msra.mxu0 0
      %482 = vmatprep.subr.bf16.mxu0 0
      %483 = vmatpush1.bf16.msra.mxu0 0
      %484 = vmatprep.subr.bf16.mxu0 0
      %485 = vmatpush1.bf16.msra.mxu0 0
      %486 = vmatprep.subr.bf16.mxu0 0
      %487 = vmatpush1.bf16.msra.mxu0 0
      %488 = vmatprep.subr.bf16.mxu0 0
      %489 = vmatpush1.bf16.msra.mxu0 0
      %490 = vmatprep.subr.bf16.mxu0 0
      %491 = vmatpush1.bf16.msra.mxu0 0
      %492 = vmatprep.mubr.bf16.mxu0 0
      %493 = vmatmul.mubr.bf16.gmra.mrb[0].mxu0 %v454
      %v494 = vpop.f32.mrb[0].mxu0
      %v495 = vadd.f32 %v429, %v494
      %v496 = vpop.f32.mrb[0].mxu0
      %v497 = vpop.f32.mrb[0].mxu0
      %v498 = vadd.f32 %v429, %v497
      %v499 = vpop.f32.mrb[0].mxu0
      %500 = vdwg.mxu0
      %v501 = vmax.f32 %v495, 0.0
      %v502 = vmax.f32 %v498, 0.0
      %503 = vst.msk [vmem:[%s263] sm:$0xff] %vm276, %v501
      %504 = vst.msk [vmem:[%s263 + $0x8] sm:$0xff] %vm276, %v502
      %s505 = smul.u32 2, %s20
      %p506 = scmp.lt.s32.totalorder %s19, 1
      %s507 = scalar_select %p506, %s19, 1
      %p508 = scmp.lt.s32.totalorder %s505, 1
      %s509 = scalar_select %p508, %s505, 1
      %s510 = smul.addr %s507, 2
      %s511 = sadd.s32 %s509, %s510
      %s512 = smul.addr %s511, 8
      %s513 = scalar_lea.vmem %s4, %s512
      // Predicated region
      $region37: #{tpu_custom_call.1} parent=35 // pred_check
        %p514 = pneg %p145
      $region38: #{tpu_custom_call.1} parent=35 // pred_check_branch
        %516 = sbr.rel (%p514) target = $region40
      $region39: #{tpu_custom_call.1} parent=35 // pred_region
        %s517 = smul.u32 2, %s20
      $region40: #{tpu_custom_call.1} parent=35 // pred_fallthru
        _
    $region36: #{tpu_custom_call.1} parent=5 // pred_fallthru
      _
    %p518 = scmp.le.s32.totalorder 2, %s10
    // Predicated region
    $region41: #{tpu_custom_call.1} parent=5 // pred_check
      %p519 = pneg %p518
    $region42: #{tpu_custom_call.1} parent=5 // pred_check_branch
      %521 = sbr.rel (%p519) target = $region44
    $region43: #{tpu_custom_call.1} parent=5 // pred_region
      %s522 = ssub.s32 %s10, 2
      // Predicated region
      $region45: #{tpu_custom_call.1} parent=43 // pred_check
        %p523 = pneg %p151
      $region46: #{tpu_custom_call.1} parent=43 // pred_check_branch
        %525 = sbr.rel (%p523) target = $region48
      $region47: #{tpu_custom_call.1} parent=43 // pred_region
        %s526 = smul.u32 2, %s22
        %p527 = scmp.lt.s32.totalorder %s21, 1
        %s528 = scalar_select %p527, %s21, 1
        %p529 = scmp.lt.s32.totalorder %s526, 1
        %s530 = scalar_select %p529, %s526, 1
        %s531 = smul.addr %s528, 2
        %s532 = sadd.s32 %s530, %s531
        %s533 = smul.addr %s532, 8
        %s534 = scalar_lea.vmem %s4, %s533
      $region48: #{tpu_custom_call.1} parent=43 // pred_fallthru
        _
    $region44: #{tpu_custom_call.1} parent=5 // pred_fallthru
      _
  $region6: #{tpu_custom_call.1} parent=0 // loop_footer
    %s14 = sadd.s32 1, %s10
  $region7: #{tpu_custom_call.1} parent=0 // loop_footer_branch
    %9 = sbr.rel target = $region3
  $region8: #{tpu_custom_call.1} parent=0 // loop_exit
    _

</llo_original>
